<compile_context>
chip_gen: v6e
topology: v6e:2x2x1
jax: 0.10.0
libtpu: 0.0.40
codegen_flags: <defaults>
</compile_context>

<pallas_src>
import math

import jax
import jax.numpy as jnp
from jax.experimental import pallas as pl
from jax.experimental.pallas import tpu as pltpu


def mlp_kernel(x_ref, w1_ref, b1_ref, w2_ref, b2_ref, w3_ref, b3_ref, o_ref):
    # x_ref: (input_size, TB)  -- batch on the lane axis
    x = x_ref[...]

    # layer 1: W1 (8, in) @ X (in, TB) -> (8, TB), + bias, ReLU
    h1 = jnp.dot(w1_ref[...], x, preferred_element_type=jnp.float32)
    h1 = jnp.maximum(h1 + b1_ref[...], 0.0)

    # layer 2: W2 (8, 8) @ h1 (8, TB) -> (8, TB), + bias, ReLU
    h2 = jnp.dot(w2_ref[...], h1, preferred_element_type=jnp.float32)
    h2 = jnp.maximum(h2 + b2_ref[...], 0.0)

    # layer 3: W3 (out, 8) @ h2 (8, TB) -> (out, TB), + bias
    out = jnp.dot(w3_ref[...], h2, preferred_element_type=jnp.float32)
    out = out + b3_ref[...]

    o_ref[...] = out.astype(o_ref.dtype)


def mlp_forward(x, params, *, tb=512):
    """x: (B, input_size) f32; params in PyTorch layout:
    weights (out_features, in_features), biases (out_features,)."""
    w1, b1, w2, b2, w3, b3 = params
    B, in_size = x.shape
    out_size = w3.shape[0]

    # Lane-dense layout: batch becomes the last (128-lane) dim.
    xt = x.T                      # (in_size, B)
    b1c = b1.reshape(-1, 1)       # (8, 1)   broadcasts over lanes
    b2c = b2.reshape(-1, 1)
    b3c = b3.reshape(-1, 1)

    # Batch tile: single full-array block for small B, else a multiple-of-128
    # tile so the pipeline double-buffers x against compute.
    if B <= tb:
        TB = B
    else:
        TB = tb                   # sweep 512..4096 on real workloads
    grid = (pl.cdiv(B, TB),)

    # Weights/biases: full-array blocks with constant index maps -> VMEM-resident
    # across all grid steps (no per-step DMA).
    const = lambda a: pl.BlockSpec(a.shape, lambda i: (0,) * a.ndim)

    out_t = pl.pallas_call(
        mlp_kernel,
        out_shape=jax.ShapeDtypeStruct((out_size, B), jnp.float32),
        grid_spec=pl.GridSpec(
            grid=grid,
            in_specs=[
                pl.BlockSpec((in_size, TB), lambda i: (0, i)),   # x tile, pipelined
                const(w1), const(b1c),
                const(w2), const(b2c),
                const(w3), const(b3c),
            ],
            out_specs=pl.BlockSpec((out_size, TB), lambda i: (0, i)),
        ),
        compiler_params=pltpu.CompilerParams(
            dimension_semantics=("parallel",),   # v7x: shard batch over 2 TCs
        ),
    )(xt, w1, b1c, w2, b2c, w3, b3c)

    return out_t.T                # back to (B, out_size)


def init_params(key, input_size, output_size):
    """Deterministic init mimicking PyTorch's default Linear init
    (uniform in +-1/sqrt(fan_in)).  Weights stored PyTorch-style (out, in)."""
    def linear(k, fan_in, fan_out):
        kw, kb = jax.random.split(k)
        bound = 1.0 / math.sqrt(fan_in)
        w = jax.random.uniform(kw, (fan_out, fan_in), jnp.float32, -bound, bound)
        b = jax.random.uniform(kb, (fan_out,), jnp.float32, -bound, bound)
        return w, b

    k1, k2, k3 = jax.random.split(key, 3)
    w1, b1 = linear(k1, input_size, 8)
    w2, b2 = linear(k2, 8, 8)
    w3, b3 = linear(k3, 8, output_size)
    return (w1, b1, w2, b2, w3, b3)


def reference_forward(x, params):
    """Pure-JAX reference with PyTorch semantics: x @ W.T + b."""
    w1, b1, w2, b2, w3, b3 = params
    h1 = jnp.maximum(x @ w1.T + b1, 0.0)
    h2 = jnp.maximum(h1 @ w2.T + b2, 0.0)
    return h2 @ w3.T + b3


if __name__ == "__main__":
    key = jax.random.PRNGKey(0)
    k_x, k_p, k_x2 = jax.random.split(key, 3)

    input_size = 16
    output_size = 4
    params = init_params(k_p, input_size, output_size)

    # Small-shape check (single block: block dims == full array dims).
    batch = 8
    x = jax.random.normal(k_x, (batch, input_size), jnp.float32)
    out = jax.block_until_ready(mlp_forward(x, params))
    ref = reference_forward(x, params)
    assert out.shape == (batch, output_size)
    assert jnp.allclose(out, ref, atol=1e-5, rtol=1e-5), "small-batch mismatch"

    # Tiled/pipelined path check (grid=(4,), TB=256 lane-dense batch tiles).
    batch2 = 1024
    x2 = jax.random.normal(k_x2, (batch2, input_size), jnp.float32)
    out2 = jax.block_until_ready(mlp_forward(x2, params, tb=256))
    ref2 = reference_forward(x2, params)
    assert out2.shape == (batch2, output_size)
    assert jnp.allclose(out2, ref2, atol=1e-5, rtol=1e-5), "tiled-batch mismatch"

    print("KERNEL_OK")
</pallas_src>

<mosaic_0001>
module attributes {stable_mosaic.version = 11 : i64} {
  func.func @mlp_kernel(%arg0: i32, %arg1: memref<16x8xf32, #tpu.memory_space<vmem>>, %arg2: memref<8x16xf32, #tpu.memory_space<vmem>>, %arg3: memref<8x1xf32, #tpu.memory_space<vmem>>, %arg4: memref<8x8xf32, #tpu.memory_space<vmem>>, %arg5: memref<8x1xf32, #tpu.memory_space<vmem>>, %arg6: memref<4x8xf32, #tpu.memory_space<vmem>>, %arg7: memref<4x1xf32, #tpu.memory_space<vmem>>, %arg8: memref<4x8xf32, #tpu.memory_space<vmem>>) attributes {dimension_semantics = [#tpu.dimension_semantics<parallel>], iteration_bounds = array<i64: 1>, scalar_prefetch = 0 : i64, scratch_operands = 0 : i64, tpu.core_type = #tpu.core_type<tc>, window_params = [{transform_indices = @transform_0, window_bounds = array<i64: 16, 8>}, {pipeline_mode = #tpu.pipeline_mode<synchronous>, transform_indices = @transform_1, window_bounds = array<i64: 8, 16>}, {pipeline_mode = #tpu.pipeline_mode<synchronous>, transform_indices = @transform_2, window_bounds = array<i64: 8, 1>}, {pipeline_mode = #tpu.pipeline_mode<synchronous>, transform_indices = @transform_3, window_bounds = array<i64: 8, 8>}, {pipeline_mode = #tpu.pipeline_mode<synchronous>, transform_indices = @transform_4, window_bounds = array<i64: 8, 1>}, {pipeline_mode = #tpu.pipeline_mode<synchronous>, transform_indices = @transform_5, window_bounds = array<i64: 4, 8>}, {pipeline_mode = #tpu.pipeline_mode<synchronous>, transform_indices = @transform_6, window_bounds = array<i64: 4, 1>}, {transform_indices = @transform_7, window_bounds = array<i64: 4, 8>}]} {
    %c0 = arith.constant 0 : index
    %c0_0 = arith.constant 0 : index
    %0 = vector.load %arg1[%c0, %c0_0] : memref<16x8xf32, #tpu.memory_space<vmem>>, vector<16x8xf32>
    %c0_1 = arith.constant 0 : index
    %c0_2 = arith.constant 0 : index
    %1 = vector.load %arg2[%c0_1, %c0_2] : memref<8x16xf32, #tpu.memory_space<vmem>>, vector<8x16xf32>
    %cst = arith.constant dense<0.000000e+00> : vector<8x8xf32>
    %2 = tpu.matmul %1, %0, %cst {dimension_numbers = #tpu.dot_dimension_numbers<[1], [0], [0], [1], [0, 0, 1, 1], [], []>} : vector<8x16xf32>, vector<16x8xf32>, vector<8x8xf32> -> vector<8x8xf32>
    %c0_3 = arith.constant 0 : index
    %c0_4 = arith.constant 0 : index
    %3 = vector.load %arg3[%c0_3, %c0_4] : memref<8x1xf32, #tpu.memory_space<vmem>>, vector<8x1xf32>
    %4 = vector.broadcast %3 : vector<8x1xf32> to vector<8x8xf32>
    %5 = arith.addf %2, %4 : vector<8x8xf32>
    %cst_5 = arith.constant 0.000000e+00 : f32
    %6 = vector.broadcast %cst_5 : f32 to vector<8x8xf32>
    %7 = arith.maximumf %5, %6 : vector<8x8xf32>
    %c0_6 = arith.constant 0 : index
    %c0_7 = arith.constant 0 : index
    %8 = vector.load %arg4[%c0_6, %c0_7] : memref<8x8xf32, #tpu.memory_space<vmem>>, vector<8x8xf32>
    %cst_8 = arith.constant dense<0.000000e+00> : vector<8x8xf32>
    %9 = tpu.matmul %8, %7, %cst_8 {dimension_numbers = #tpu.dot_dimension_numbers<[1], [0], [0], [1], [0, 0, 1, 1], [], []>} : vector<8x8xf32>, vector<8x8xf32>, vector<8x8xf32> -> vector<8x8xf32>
    %c0_9 = arith.constant 0 : index
    %c0_10 = arith.constant 0 : index
    %10 = vector.load %arg5[%c0_9, %c0_10] : memref<8x1xf32, #tpu.memory_space<vmem>>, vector<8x1xf32>
    %11 = vector.broadcast %10 : vector<8x1xf32> to vector<8x8xf32>
    %12 = arith.addf %9, %11 : vector<8x8xf32>
    %cst_11 = arith.constant 0.000000e+00 : f32
    %13 = vector.broadcast %cst_11 : f32 to vector<8x8xf32>
    %14 = arith.maximumf %12, %13 : vector<8x8xf32>
    %c0_12 = arith.constant 0 : index
    %c0_13 = arith.constant 0 : index
    %15 = vector.load %arg6[%c0_12, %c0_13] : memref<4x8xf32, #tpu.memory_space<vmem>>, vector<4x8xf32>
    %cst_14 = arith.constant dense<0.000000e+00> : vector<4x8xf32>
    %16 = tpu.matmul %15, %14, %cst_14 {dimension_numbers = #tpu.dot_dimension_numbers<[1], [0], [0], [1], [0, 0, 1, 1], [], []>} : vector<4x8xf32>, vector<8x8xf32>, vector<4x8xf32> -> vector<4x8xf32>
    %c0_15 = arith.constant 0 : index
    %c0_16 = arith.constant 0 : index
    %17 = vector.load %arg7[%c0_15, %c0_16] : memref<4x1xf32, #tpu.memory_space<vmem>>, vector<4x1xf32>
    %18 = vector.broadcast %17 : vector<4x1xf32> to vector<4x8xf32>
    %19 = arith.addf %16, %18 : vector<4x8xf32>
    %c0_17 = arith.constant 0 : index
    %c0_18 = arith.constant 0 : index
    %20 = vector.load %arg8[%c0_17, %c0_18] : memref<4x8xf32, #tpu.memory_space<vmem>>, vector<4x8xf32>
    tpu.vector_store %arg8[%c0_17, %c0_18], %19 {strides = array<i32>} : memref<4x8xf32, #tpu.memory_space<vmem>>, vector<4x8xf32>,
    return
  }
  func.func @transform_0(%arg0: i32) -> (i32, i32) {
    %c0_i32 = arith.constant 0 : i32
    %c0_i32_0 = arith.constant 0 : i32
    return %c0_i32, %arg0 : i32, i32
  }
  func.func @transform_1(%arg0: i32) -> (i32, i32) {
    %c0_i32 = arith.constant 0 : i32
    %c0_i32_0 = arith.constant 0 : i32
    %c0_i32_1 = arith.constant 0 : i32
    return %c0_i32, %c0_i32_0 : i32, i32
  }
  func.func @transform_2(%arg0: i32) -> (i32, i32) {
    %c0_i32 = arith.constant 0 : i32
    %c0_i32_0 = arith.constant 0 : i32
    %c0_i32_1 = arith.constant 0 : i32
    return %c0_i32, %c0_i32_0 : i32, i32
  }
  func.func @transform_3(%arg0: i32) -> (i32, i32) {
    %c0_i32 = arith.constant 0 : i32
    %c0_i32_0 = arith.constant 0 : i32
    %c0_i32_1 = arith.constant 0 : i32
    return %c0_i32, %c0_i32_0 : i32, i32
  }
  func.func @transform_4(%arg0: i32) -> (i32, i32) {
    %c0_i32 = arith.constant 0 : i32
    %c0_i32_0 = arith.constant 0 : i32
    %c0_i32_1 = arith.constant 0 : i32
    return %c0_i32, %c0_i32_0 : i32, i32
  }
  func.func @transform_5(%arg0: i32) -> (i32, i32) {
    %c0_i32 = arith.constant 0 : i32
    %c0_i32_0 = arith.constant 0 : i32
    %c0_i32_1 = arith.constant 0 : i32
    return %c0_i32, %c0_i32_0 : i32, i32
  }
  func.func @transform_6(%arg0: i32) -> (i32, i32) {
    %c0_i32 = arith.constant 0 : i32
    %c0_i32_0 = arith.constant 0 : i32
    %c0_i32_1 = arith.constant 0 : i32
    return %c0_i32, %c0_i32_0 : i32, i32
  }
  func.func @transform_7(%arg0: i32) -> (i32, i32) {
    %c0_i32 = arith.constant 0 : i32
    %c0_i32_0 = arith.constant 0 : i32
    return %c0_i32, %arg0 : i32, i32
  }
}

</mosaic_0001>

<llo_original>
// kernel: tpu_custom_call.1
$region0: #{tpu_custom_call.1}
  #allocation0 [shape = 'u32[]', space=smem, size = 0x4, offset = 0x4, fixed_abs, tag = 'smem constant byte address 0x4 - core index']
  #allocation1 [shape = 'u32[144,128]{1,0:T(1,128)}', space=vmem, size = 0x12000, scoped, tag = 'internal scratch']
  %s0 = inlined_call_operand.vmem [shape: f32[16,8], index: 0, kind: input, shape index: {}]
  %s1 = inlined_call_operand.vmem [shape: f32[8,16], index: 1, kind: input, shape index: {}]
  %s2 = inlined_call_operand.vmem [shape: f32[8,1], index: 2, kind: input, shape index: {}]
  %s3 = inlined_call_operand.vmem [shape: f32[8,8], index: 3, kind: input, shape index: {}]
  %s4 = inlined_call_operand.vmem [shape: f32[8,1], index: 4, kind: input, shape index: {}]
  %s5 = inlined_call_operand.vmem [shape: f32[4,8], index: 5, kind: input, shape index: {}]
  %s6 = inlined_call_operand.vmem [shape: f32[4,1], index: 6, kind: input, shape index: {}]
  %s7 = inlined_call_operand.hbm [shape: f32[4,8], index: 7, kind: output, shape index: {}]
  %s8 = sld [smem:[#allocation0]]
  $region38: #{tpu_custom_call.1} parent=0
    _
  %s10 = ssub.s32 1, %s8
  %s11 = scalar_select 0, %s10, %s8
  $region1: #{tpu_custom_call.1} parent=0
    #allocation2 [shape = 'u8[2048]{0}', space=vmem, size = 0x800, scoped, tag = 'output window, operand 0, single buffered']
    #allocation3 [shape = 's32[1]{0}', space=sflag, size = 0x4, scoped, tag = 'scoped memory for tpu_custom_call.1']
    %12 = vsyncpa [#allocation3], 0
    // Predicated region
    $region2: #{tpu_custom_call.1} parent=1 // pred_check
      _
    $region3: #{tpu_custom_call.1} parent=1 // pred_check_branch
      %14 = sbr.rel (0) target = $region5
    $region4: #{tpu_custom_call.1} parent=1 // pred_region
      _
    $region5: #{tpu_custom_call.1} parent=1 // pred_fallthru
      _
    // Predicated region
    $region6: #{tpu_custom_call.1} parent=1 // pred_check
      _
    $region7: #{tpu_custom_call.1} parent=1 // pred_check_branch
      %16 = sbr.rel (0) target = $region9
    $region8: #{tpu_custom_call.1} parent=1 // pred_region
      _
    $region9: #{tpu_custom_call.1} parent=1 // pred_fallthru
      _
    // Predicated region
    $region10: #{tpu_custom_call.1} parent=1 // pred_check
      _
    $region11: #{tpu_custom_call.1} parent=1 // pred_check_branch
      %18 = sbr.rel (0) target = $region13
    $region12: #{tpu_custom_call.1} parent=1 // pred_region
      _
    $region13: #{tpu_custom_call.1} parent=1 // pred_fallthru
      _
    // Predicated region
    $region14: #{tpu_custom_call.1} parent=1 // pred_check
      _
    $region15: #{tpu_custom_call.1} parent=1 // pred_check_branch
      %20 = sbr.rel (0) target = $region17
    $region16: #{tpu_custom_call.1} parent=1 // pred_region
      _
    $region17: #{tpu_custom_call.1} parent=1 // pred_fallthru
      _
    // Predicated region
    $region18: #{tpu_custom_call.1} parent=1 // pred_check
      _
    $region19: #{tpu_custom_call.1} parent=1 // pred_check_branch
      %22 = sbr.rel (0) target = $region21
    $region20: #{tpu_custom_call.1} parent=1 // pred_region
      _
    $region21: #{tpu_custom_call.1} parent=1 // pred_fallthru
      _
    // Predicated region
    $region22: #{tpu_custom_call.1} parent=1 // pred_check
      _
    $region23: #{tpu_custom_call.1} parent=1 // pred_check_branch
      %24 = sbr.rel (0) target = $region25
    $region24: #{tpu_custom_call.1} parent=1 // pred_region
      _
    $region25: #{tpu_custom_call.1} parent=1 // pred_fallthru
      _
    // Predicated region
    $region26: #{tpu_custom_call.1} parent=1 // pred_check
      _
    $region27: #{tpu_custom_call.1} parent=1 // pred_check_branch
      %26 = sbr.rel (0) target = $region29
    $region28: #{tpu_custom_call.1} parent=1 // pred_region
      _
    $region29: #{tpu_custom_call.1} parent=1 // pred_fallthru
      _
    %v27 = vld [vmem:[%s0] sm:$0xff]
    %v28 = vld [vmem:[%s0 + $0x8] sm:$0xff]
    %v29 = vld [vmem:[%s1] sm:$0xff]
    %v30 = vld [vmem:[%s2] sm:$0xff]
    %32 = vset.pattern.permute.xlu0 0
    %33 = vperm.xlu0 %32, %v30
    %v34 = vpop.permute.xlu0 %33
    %vm36 = vcmask 130048
    %v38 = vsel %vm36, %v29, 0
    %40 = vmatprep.subr.mxu0 0.0
    %41 = vmatpush1.msra.mxu0 0.0
    %42 = vmatprep.subr.mxu0 0.0
    %43 = vmatpush1.msra.mxu0 0.0
    %44 = vmatprep.subr.mxu0 0.0
    %45 = vmatpush1.msra.mxu0 0.0
    %46 = vmatprep.subr.mxu0 0.0
    %47 = vmatpush1.msra.mxu0 0.0
    %48 = vmatprep.subr.mxu0 0.0
    %49 = vmatpush1.msra.mxu0 0.0
    %50 = vmatprep.subr.mxu0 0.0
    %51 = vmatpush1.msra.mxu0 0.0
    %52 = vmatprep.subr.mxu0 0.0
    %53 = vmatpush1.msra.mxu0 0.0
    %54 = vmatprep.subr.mxu0 0.0
    %55 = vmatpush1.msra.mxu0 0.0
    %56 = vmatprep.subr.mxu0 0.0
    %57 = vmatpush1.msra.mxu0 0.0
    %58 = vmatprep.subr.mxu0 0.0
    %59 = vmatpush1.msra.mxu0 0.0
    %60 = vmatprep.subr.mxu0 0.0
    %61 = vmatpush1.msra.mxu0 0.0
    %62 = vmatprep.subr.mxu0 0.0
    %63 = vmatpush1.msra.mxu0 0.0
    %64 = vmatprep.subr.mxu0 0.0
    %65 = vmatpush1.msra.mxu0 0.0
    %66 = vmatprep.subr.mxu0 0.0
    %67 = vmatpush1.msra.mxu0 0.0
    %68 = vmatprep.subr.mxu0 0.0
    %69 = vmatpush1.msra.mxu0 %v28
    %70 = vmatprep.subr.mxu0 0.0
    %71 = vmatpush1.msra.mxu0 %v27
    %72 = vmatprep.subr.mxu0 0.0
    %73 = vmatpush2.msra.mxu0 0.0
    %74 = vmatprep.subr.mxu0 0.0
    %75 = vmatpush2.msra.mxu0 0.0
    %76 = vmatprep.subr.mxu0 0.0
    %77 = vmatpush2.msra.mxu0 0.0
    %78 = vmatprep.subr.mxu0 0.0
    %79 = vmatpush2.msra.mxu0 0.0
    %80 = vmatprep.subr.mxu0 0.0
    %81 = vmatpush2.msra.mxu0 0.0
    %82 = vmatprep.subr.mxu0 0.0
    %83 = vmatpush2.msra.mxu0 0.0
    %84 = vmatprep.subr.mxu0 0.0
    %85 = vmatpush2.msra.mxu0 0.0
    %86 = vmatprep.subr.mxu0 0.0
    %87 = vmatpush2.msra.mxu0 0.0
    %88 = vmatprep.subr.mxu0 0.0
    %89 = vmatpush2.msra.mxu0 0.0
    %90 = vmatprep.subr.mxu0 0.0
    %91 = vmatpush2.msra.mxu0 0.0
    %92 = vmatprep.subr.mxu0 0.0
    %93 = vmatpush2.msra.mxu0 0.0
    %94 = vmatprep.subr.mxu0 0.0
    %95 = vmatpush2.msra.mxu0 0.0
    %96 = vmatprep.subr.mxu0 0.0
    %97 = vmatpush2.msra.mxu0 0.0
    %98 = vmatprep.subr.mxu0 0.0
    %99 = vmatpush2.msra.mxu0 0.0
    %100 = vmatprep.subr.mxu0 0.0
    %101 = vmatpush2.msra.mxu0 0.0
    %102 = vmatprep.subr.mxu0 0.0
    %103 = vmatpush2.msra.mxu0 0.0
    %104 = vmatprep.mubr.f32.mxu0 0.0
    %105 = vmatmul.mubr.f32.gmra.mxu0 %v38
    %v106 = vpop.f32.mrf.mxu0
    %v107 = vadd.f32 %v34, %v106
    %v108 = vpop.f32.mrf.mxu0
    %109 = vdwg.mxu0
    %v110 = vmax.f32 %v107, 0.0
    %v111 = vld [vmem:[%s3] sm:$0xff]
    %v112 = vld [vmem:[%s4] sm:$0xff]
    %114 = vset.pattern.permute.xlu0 0
    %115 = vperm.xlu0 %114, %v112
    %v116 = vpop.permute.xlu0 %115
    %vm118 = vcmask 64512
    %v120 = vsel %vm118, %v111, 0
    %122 = vmatprep.subr.mxu0 0.0
    %123 = vmatpush1.msra.mxu0 0.0
    %124 = vmatprep.subr.mxu0 0.0
    %125 = vmatpush1.msra.mxu0 0.0
    %126 = vmatprep.subr.mxu0 0.0
    %127 = vmatpush1.msra.mxu0 0.0
    %128 = vmatprep.subr.mxu0 0.0
    %129 = vmatpush1.msra.mxu0 0.0
    %130 = vmatprep.subr.mxu0 0.0
    %131 = vmatpush1.msra.mxu0 0.0
    %132 = vmatprep.subr.mxu0 0.0
    %133 = vmatpush1.msra.mxu0 0.0
    %134 = vmatprep.subr.mxu0 0.0
    %135 = vmatpush1.msra.mxu0 0.0
    %136 = vmatprep.subr.mxu0 0.0
    %137 = vmatpush1.msra.mxu0 0.0
    %138 = vmatprep.subr.mxu0 0.0
    %139 = vmatpush1.msra.mxu0 0.0
    %140 = vmatprep.subr.mxu0 0.0
    %141 = vmatpush1.msra.mxu0 0.0
    %142 = vmatprep.subr.mxu0 0.0
    %143 = vmatpush1.msra.mxu0 0.0
    %144 = vmatprep.subr.mxu0 0.0
    %145 = vmatpush1.msra.mxu0 0.0
    %146 = vmatprep.subr.mxu0 0.0
    %147 = vmatpush1.msra.mxu0 0.0
    %148 = vmatprep.subr.mxu0 0.0
    %149 = vmatpush1.msra.mxu0 0.0
    %150 = vmatprep.subr.mxu0 0.0
    %151 = vmatpush1.msra.mxu0 0.0
    %152 = vmatprep.subr.mxu0 0.0
    %153 = vmatpush1.msra.mxu0 %v110
    %154 = vmatprep.subr.mxu0 0.0
    %155 = vmatpush2.msra.mxu0 0.0
    %156 = vmatprep.subr.mxu0 0.0
    %157 = vmatpush2.msra.mxu0 0.0
    %158 = vmatprep.subr.mxu0 0.0
    %159 = vmatpush2.msra.mxu0 0.0
    %160 = vmatprep.subr.mxu0 0.0
    %161 = vmatpush2.msra.mxu0 0.0
    %162 = vmatprep.subr.mxu0 0.0
    %163 = vmatpush2.msra.mxu0 0.0
    %164 = vmatprep.subr.mxu0 0.0
    %165 = vmatpush2.msra.mxu0 0.0
    %166 = vmatprep.subr.mxu0 0.0
    %167 = vmatpush2.msra.mxu0 0.0
    %168 = vmatprep.subr.mxu0 0.0
    %169 = vmatpush2.msra.mxu0 0.0
    %170 = vmatprep.subr.mxu0 0.0
    %171 = vmatpush2.msra.mxu0 0.0
    %172 = vmatprep.subr.mxu0 0.0
    %173 = vmatpush2.msra.mxu0 0.0
    %174 = vmatprep.subr.mxu0 0.0
    %175 = vmatpush2.msra.mxu0 0.0
    %176 = vmatprep.subr.mxu0 0.0
    %177 = vmatpush2.msra.mxu0 0.0
    %178 = vmatprep.subr.mxu0 0.0
    %179 = vmatpush2.msra.mxu0 0.0
    %180 = vmatprep.subr.mxu0 0.0
    %181 = vmatpush2.msra.mxu0 0.0
    %182 = vmatprep.subr.mxu0 0.0
    %183 = vmatpush2.msra.mxu0 0.0
    %184 = vmatprep.subr.mxu0 0.0
    %185 = vmatpush2.msra.mxu0 0.0
    %186 = vmatprep.mubr.f32.mxu0 0.0
    %187 = vmatmul.mubr.f32.gmra.mxu0 %v120
    %v188 = vpop.f32.mrf.mxu0
    %v189 = vadd.f32 %v116, %v188
    %v190 = vpop.f32.mrf.mxu0
    %191 = vdwg.mxu0
    %v192 = vmax.f32 %v189, 0.0
    %v193 = vld [vmem:[%s5] sm:$0xf]
    %v194 = vld [vmem:[%s6] sm:$0xf]
    %196 = vset.pattern.permute.xlu0 0
    %197 = vperm.xlu0 %196, %v194
    %v198 = vpop.permute.xlu0 %197
    %v201 = vsel %vm118, %v193, 0
    %203 = vmatprep.subr.mxu0 0.0
    %204 = vmatpush1.msra.mxu0 0.0
    %205 = vmatprep.subr.mxu0 0.0
    %206 = vmatpush1.msra.mxu0 0.0
    %207 = vmatprep.subr.mxu0 0.0
    %208 = vmatpush1.msra.mxu0 0.0
    %209 = vmatprep.subr.mxu0 0.0
    %210 = vmatpush1.msra.mxu0 0.0
    %211 = vmatprep.subr.mxu0 0.0
    %212 = vmatpush1.msra.mxu0 0.0
    %213 = vmatprep.subr.mxu0 0.0
    %214 = vmatpush1.msra.mxu0 0.0
    %215 = vmatprep.subr.mxu0 0.0
    %216 = vmatpush1.msra.mxu0 0.0
    %217 = vmatprep.subr.mxu0 0.0
    %218 = vmatpush1.msra.mxu0 0.0
    %219 = vmatprep.subr.mxu0 0.0
    %220 = vmatpush1.msra.mxu0 0.0
    %221 = vmatprep.subr.mxu0 0.0
    %222 = vmatpush1.msra.mxu0 0.0
    %223 = vmatprep.subr.mxu0 0.0
    %224 = vmatpush1.msra.mxu0 0.0
    %225 = vmatprep.subr.mxu0 0.0
    %226 = vmatpush1.msra.mxu0 0.0
    %227 = vmatprep.subr.mxu0 0.0
    %228 = vmatpush1.msra.mxu0 0.0
    %229 = vmatprep.subr.mxu0 0.0
    %230 = vmatpush1.msra.mxu0 0.0
    %231 = vmatprep.subr.mxu0 0.0
    %232 = vmatpush1.msra.mxu0 0.0
    %233 = vmatprep.subr.mxu0 0.0
    %234 = vmatpush1.msra.mxu0 %v192
    %235 = vmatprep.subr.mxu0 0.0
    %236 = vmatpush2.msra.mxu0 0.0
    %237 = vmatprep.subr.mxu0 0.0
    %238 = vmatpush2.msra.mxu0 0.0
    %239 = vmatprep.subr.mxu0 0.0
    %240 = vmatpush2.msra.mxu0 0.0
    %241 = vmatprep.subr.mxu0 0.0
    %242 = vmatpush2.msra.mxu0 0.0
    %243 = vmatprep.subr.mxu0 0.0
    %244 = vmatpush2.msra.mxu0 0.0
    %245 = vmatprep.subr.mxu0 0.0
    %246 = vmatpush2.msra.mxu0 0.0
    %247 = vmatprep.subr.mxu0 0.0
    %248 = vmatpush2.msra.mxu0 0.0
    %249 = vmatprep.subr.mxu0 0.0
    %250 = vmatpush2.msra.mxu0 0.0
    %251 = vmatprep.subr.mxu0 0.0
    %252 = vmatpush2.msra.mxu0 0.0
    %253 = vmatprep.subr.mxu0 0.0
    %254 = vmatpush2.msra.mxu0 0.0
    %255 = vmatprep.subr.mxu0 0.0
    %256 = vmatpush2.msra.mxu0 0.0
    %257 = vmatprep.subr.mxu0 0.0
    %258 = vmatpush2.msra.mxu0 0.0
    %259 = vmatprep.subr.mxu0 0.0
    %260 = vmatpush2.msra.mxu0 0.0
    %261 = vmatprep.subr.mxu0 0.0
    %262 = vmatpush2.msra.mxu0 0.0
    %263 = vmatprep.subr.mxu0 0.0
    %264 = vmatpush2.msra.mxu0 0.0
    %265 = vmatprep.subr.mxu0 0.0
    %266 = vmatpush2.msra.mxu0 0.0
    %267 = vmatprep.mubr.f32.mxu0 0.0
    %268 = vmatmul.mubr.f32.gmra.mxu0 %v201
    %v269 = vpop.f32.mrf.mxu0
    %v270 = vadd.f32 %v198, %v269
    %v271 = vpop.f32.mrf.mxu0
    %272 = vdwg.mxu0
    %vm273 = vcmask 60416
    %274 = vst.msk [vmem:[#allocation2] sm:$0xf] %vm273, %v270
    // Predicated region
    $region30: #{tpu_custom_call.1} parent=1 // pred_check
      _
    $region31: #{tpu_custom_call.1} parent=1 // pred_check_branch
      %276 = sbr.rel (0) target = $region33
    $region32: #{tpu_custom_call.1} parent=1 // pred_region
      %s278 = ssub.s32 64, 64
      %279 = vsyncadd [#allocation3], %s278
      %s281 = sshll.u32 [#allocation2], 4
      %s282 = int_to_ptr.vmem [resolvable:$true] %s281
      %284 = dma.vmem_to_hbm [thread:$0]  %s282, 64, %s7, [#allocation3]
    $region33: #{tpu_custom_call.1} parent=1 // pred_fallthru
      _
    // Predicated region
    $region34: #{tpu_custom_call.1} parent=1 // pred_check
      _
    $region35: #{tpu_custom_call.1} parent=1 // pred_check_branch
      %286 = sbr.rel (0) target = $region37
    $region36: #{tpu_custom_call.1} parent=1 // pred_region
      %287 = dma.done [#allocation3], 64
    $region37: #{tpu_custom_call.1} parent=1 // pred_fallthru
      _
    %288 = vsyncpa [#allocation3], 1

</llo_original>
